<compile_context>
chip_gen: v7x
topology: tpu7x:2x2x1
jax: 0.10.0
libtpu: 0.0.40
codegen_flags: <defaults>
</compile_context>

<pallas_src>
import functools
import math

import jax
import jax.numpy as jnp
from jax.experimental import pallas as pl
from jax.experimental.pallas import tpu as pltpu


# --------------------------------------------------------------------------
# Hardware-aware budgets
# --------------------------------------------------------------------------

_VMEM_HEADROOM = 12 << 20          # leave room for compiler-internal scratch
_TILE_CANDIDATES = (2048, 1024, 512, 256, 128, 64, 32, 16, 8)


def _vmem_capacity_bytes():
    """Per-core VMEM capacity (64 MiB on v7x, 128 MiB on v5e/v6e)."""
    try:
        return int(pltpu.get_tpu_info().vmem_capacity_bytes)
    except Exception:  # pragma: no cover - conservative default
        return 128 << 20


def _vmem_limit(needed_bytes, capacity):
    # Explicit scoped-VMEM limit: what we need + slack, never the whole chip
    # (requesting all of v7x's 64 MiB risks compile failure / forced spills).
    hi = max(capacity - _VMEM_HEADROOM, 16 << 20)
    return int(min(max(needed_bytes + (4 << 20), 16 << 20), hi))


def _round_up(a, b):
    return (a + b - 1) // b * b


def _pick_tile(n, candidates, fits):
    """Largest candidate tile that fits the byte budget, preferring divisors
    of n; if no divisor fits, return a fitting tile and let the caller pad
    (bounded by one tile, never the full matrix)."""
    fitting = [t for t in candidates if fits(t)]
    if not fitting:
        return None
    for t in fitting:
        if n % t == 0:
            return t
    cap = _round_up(n, fitting[-1])
    for t in fitting:
        if t <= cap:
            return t
    return fitting[-1]


# --------------------------------------------------------------------------
# Single-buffering of constant-index blocks (pl.Buffered(1)) with fallback
# --------------------------------------------------------------------------

_single_buffer_ok = True


def _const_block_spec(block_shape, index_map, single_buffer):
    """BlockSpec for blocks whose index never changes across the grid."""
    if single_buffer:
        return pl.BlockSpec(block_shape, index_map, pipeline_mode=pl.Buffered(1))
    return pl.BlockSpec(block_shape, index_map)


def _run_with_buffer_fallback(build):
    """build(single_buffer: bool) constructs + invokes the pallas_call."""
    global _single_buffer_ok
    if _single_buffer_ok:
        try:
            return build(True)
        except Exception:  # pragma: no cover - older JAX / lowering reject
            _single_buffer_ok = False
    return build(False)


# --------------------------------------------------------------------------
# Kernels
# --------------------------------------------------------------------------


def _support_kernel(x_ref, w_ref, o_ref):
    # support row tile = x_tile @ W  (f32 MXU accumulation, cast on store)
    o_ref[...] = jnp.dot(
        x_ref[...], w_ref[...], preferred_element_type=jnp.float32
    ).astype(o_ref.dtype)


def _agg_resident_kernel(*refs, has_bias):
    # output row tile = adj_row_tile @ support_slab (+ bias)
    if has_bias:
        adj_ref, s_ref, b_ref, o_ref = refs
    else:
        adj_ref, s_ref, o_ref = refs
    out = jnp.dot(adj_ref[...], s_ref[...], preferred_element_type=jnp.float32)
    if has_bias:
        out = out + b_ref[...]
    o_ref[...] = out.astype(o_ref.dtype)


def _agg_ktiled_kernel(*refs, has_bias):
    # Contraction-tiled aggregation: accumulate adj(i,k) @ support(k) over k.
    if has_bias:
        adj_ref, s_ref, b_ref, o_ref, acc_ref = refs
    else:
        adj_ref, s_ref, o_ref, acc_ref = refs
    k = pl.program_id(1)

    @pl.when(k == 0)
    def _():
        acc_ref[...] = jnp.zeros_like(acc_ref)

    acc_ref[...] += jnp.dot(
        adj_ref[...], s_ref[...], preferred_element_type=jnp.float32
    )

    @pl.when(k == pl.num_programs(1) - 1)
    def _():
        out = acc_ref[...]
        if has_bias:
            out = out + b_ref[...]
        o_ref[...] = out.astype(o_ref.dtype)


# --------------------------------------------------------------------------
# Stage 1: support = x @ W (emitted directly in the streaming dtype)
# --------------------------------------------------------------------------


def _compute_support(x, weight, out_dtype, capacity, min_tile):
    n, f_in = x.shape
    f_out = weight.shape[1]
    xb = jnp.dtype(x.dtype).itemsize
    wb = jnp.dtype(weight.dtype).itemsize
    ob = jnp.dtype(out_dtype).itemsize
    budget = capacity - _VMEM_HEADROOM
    w_bytes = f_in * f_out * wb          # constant-index -> single buffered

    def fits(t):
        return w_bytes + 2 * t * (f_in * xb + f_out * ob) <= budget

    cands = [t for t in _TILE_CANDIDATES if t >= min_tile]
    tile = _pick_tile(n, cands, fits) or min_tile
    n1 = _round_up(n, tile)
    x1 = jnp.pad(x, ((0, n1 - n), (0, 0))) if n1 != n else x

    def build(single_buffer):
        cmult = 1 if single_buffer else 2
        needed = cmult * w_bytes + 2 * tile * (f_in * xb + f_out * ob)
        return pl.pallas_call(
            _support_kernel,
            out_shape=jax.ShapeDtypeStruct((n1, f_out), out_dtype),
            grid_spec=pltpu.PrefetchScalarGridSpec(
                num_scalar_prefetch=0,
                grid=(n1 // tile,),
                in_specs=[
                    pl.BlockSpec((tile, f_in), lambda i: (i, 0)),
                    _const_block_spec((f_in, f_out), lambda i: (0, 0),
                                      single_buffer),
                ],
                out_specs=pl.BlockSpec((tile, f_out), lambda i: (i, 0)),
            ),
            compiler_params=pltpu.CompilerParams(
                dimension_semantics=("parallel",),
                vmem_limit_bytes=_vmem_limit(needed, capacity),
            ),
        )(x1, weight)

    support = _run_with_buffer_fallback(build)
    return support[:n] if n1 != n else support


# --------------------------------------------------------------------------
# Stage 2 variants
# --------------------------------------------------------------------------


def _aggregate_resident(adj, support, bias_arr, tile_rows, capacity):
    n_pad = adj.shape[0]
    f_out = support.shape[1]
    sb = jnp.dtype(adj.dtype).itemsize
    has_bias = bias_arr is not None

    def build(single_buffer):
        cmult = 1 if single_buffer else 2
        needed = (cmult * (n_pad * f_out * sb + (f_out * 4 if has_bias else 0))
                  + 2 * tile_rows * n_pad * sb          # adj, double-buffered
                  + 2 * tile_rows * f_out * 4)          # f32 output tiles
        in_specs = [
            # adj: row tile i, all columns (the single large streamed input).
            pl.BlockSpec((tile_rows, n_pad), lambda i: (i, 0)),
            # support: resident slab, constant index across the grid.
            _const_block_spec((n_pad, f_out), lambda i: (0, 0), single_buffer),
        ]
        inputs = [adj, support]
        if has_bias:
            in_specs.append(
                _const_block_spec((1, f_out), lambda i: (0, 0), single_buffer))
            inputs.append(bias_arr)
        return pl.pallas_call(
            functools.partial(_agg_resident_kernel, has_bias=has_bias),
            out_shape=jax.ShapeDtypeStruct((n_pad, f_out), jnp.float32),
            grid_spec=pltpu.PrefetchScalarGridSpec(
                num_scalar_prefetch=0,
                grid=(n_pad // tile_rows,),
                in_specs=in_specs,
                out_specs=pl.BlockSpec((tile_rows, f_out), lambda i: (i, 0)),
            ),
            compiler_params=pltpu.CompilerParams(
                dimension_semantics=("parallel",),
                vmem_limit_bytes=_vmem_limit(needed, capacity),
            ),
        )(*inputs)

    return _run_with_buffer_fallback(build)


def _aggregate_ktiled(adj, support, bias_arr, tile_rows, tile_cols, capacity):
    n_pad = adj.shape[0]
    f_out = support.shape[1]
    sb = jnp.dtype(adj.dtype).itemsize
    has_bias = bias_arr is not None

    def build(single_buffer):
        needed = (2 * tile_rows * tile_cols * sb      # adj tiles
                  + 2 * tile_cols * f_out * sb        # support tiles
                  + 2 * tile_rows * f_out * 4         # output tiles
                  + tile_rows * f_out * 4             # accumulator
                  + (1 if single_buffer else 2) * (f_out * 4 if has_bias else 0))
        in_specs = [
            pl.BlockSpec((tile_rows, tile_cols), lambda i, k: (i, k)),
            pl.BlockSpec((tile_cols, f_out), lambda i, k: (k, 0)),
        ]
        inputs = [adj, support]
        if has_bias:
            in_specs.append(
                _const_block_spec((1, f_out), lambda i, k: (0, 0), single_buffer))
            inputs.append(bias_arr)
        return pl.pallas_call(
            functools.partial(_agg_ktiled_kernel, has_bias=has_bias),
            out_shape=jax.ShapeDtypeStruct((n_pad, f_out), jnp.float32),
            grid_spec=pltpu.PrefetchScalarGridSpec(
                num_scalar_prefetch=0,
                grid=(n_pad // tile_rows, n_pad // tile_cols),
                in_specs=in_specs,
                out_specs=pl.BlockSpec((tile_rows, f_out), lambda i, k: (i, 0)),
                scratch_shapes=[pltpu.VMEM((tile_rows, f_out), jnp.float32)],
            ),
            compiler_params=pltpu.CompilerParams(
                dimension_semantics=("parallel", "arbitrary"),
                vmem_limit_bytes=_vmem_limit(needed, capacity),
            ),
        )(*inputs)

    return _run_with_buffer_fallback(build)


# --------------------------------------------------------------------------
# Public wrapper
# --------------------------------------------------------------------------


def graph_convolution(x, adj, weight, bias=None, *, stream_dtype=jnp.bfloat16,
                      tile_rows=None, tile_cols=None):
    """Pallas implementation of GraphConvolution.forward.

    x:      (N, F_in)            activations (any float dtype; streamed as-is)
    adj:    (N, N)               dense adjacency.  For best performance cache
                                 it in `stream_dtype` once at model setup; a
                                 per-call cast here costs one extra adj pass.
    weight: (F_in, F_out)
    bias:   (F_out,) or None
    stream_dtype: dtype adj / support are streamed in (bf16 recommended;
                  MXU accumulation stays f32).  Output is always f32.
    tile_cols: forcing a value selects the contraction-tiled stage-2 path.
    """
    n, f_in = x.shape
    f_out = weight.shape[1]
    assert adj.shape == (n, n)
    stream_dtype = jnp.dtype(stream_dtype)
    sb = stream_dtype.itemsize
    has_bias = bias is not None

    capacity = _vmem_capacity_bytes()
    budget = capacity - _VMEM_HEADROOM
    bias_bytes = f_out * 4 if has_bias else 0

    # bf16 packs 16 sublanes per vreg -> keep row tiles multiples of 16.
    min_tile = 16 if (sb < 4 or jnp.dtype(x.dtype).itemsize < 4) else 8
    row_cands = [t for t in _TILE_CANDIDATES if t >= min_tile]

    # NOTE: this cast is a fallback; callers should pre-cast adj once.
    if adj.dtype != stream_dtype:
        adj = adj.astype(stream_dtype)

    # ---- path selection: resident support slab vs contraction-tiled --------
    resident_bytes = n * f_out * sb            # support slab, single-buffered

    def res_fits(t):
        return (resident_bytes + 2 * t * n * sb + 2 * t * f_out * 4
                + bias_bytes) <= budget

    use_ktiled = tile_cols is not None
    if not use_ktiled:
        if tile_rows is None:
            tile_rows = _pick_tile(n, row_cands, res_fits)
        use_ktiled = tile_rows is None

    if use_ktiled:
        # adj's last block dim must be a multiple of 128 (or the full dim).
        col_cands = [t for t in _TILE_CANDIDATES if t >= 128]
        if tile_cols is None:
            def k_fits(t):
                tr = tile_rows if tile_rows is not None else t
                return (2 * tr * t * sb + 2 * t * f_out * sb
                        + 3 * tr * f_out * 4 + bias_bytes) <= budget
            tile_cols = _pick_tile(n, col_cands, k_fits) or 128
        if tile_rows is None:
            def r_fits(t):
                return (2 * t * tile_cols * sb + 2 * tile_cols * f_out * sb
                        + 3 * t * f_out * 4 + bias_bytes) <= budget
            tile_rows = _pick_tile(n, row_cands, r_fits) or min_tile
        n_pad = _round_up(n, math.lcm(tile_rows, tile_cols))
    else:
        n_pad = _round_up(n, tile_rows)

    if n_pad != n:
        pad = n_pad - n
        adj = jnp.pad(adj, ((0, pad), (0, pad)))
        x = jnp.pad(x, ((0, pad), (0, 0)))

    # ---- stage 1: support = x @ W, emitted directly in stream_dtype --------
    support = _compute_support(x, weight, stream_dtype, capacity, min_tile)

    # ---- stage 2: output = adj @ support (+ bias) ---------------------------
    bias_arr = (jnp.asarray(bias, jnp.float32).reshape(1, f_out)
                if has_bias else None)

    if use_ktiled:
        out = _aggregate_ktiled(adj, support, bias_arr, tile_rows, tile_cols,
                                capacity)
    else:
        out = _aggregate_resident(adj, support, bias_arr, tile_rows, capacity)

    return out[:n] if n_pad != n else out


def init_params(key, in_features, out_features, bias=True):
    """Deterministic init matching GraphConvolution.reset_parameters."""
    stdv = 1.0 / math.sqrt(out_features)
    kw, kb = jax.random.split(key)
    weight = jax.random.uniform(
        kw, (in_features, out_features), jnp.float32, minval=-stdv, maxval=stdv)
    b = (jax.random.uniform(kb, (out_features,), jnp.float32,
                            minval=-stdv, maxval=stdv) if bias else None)
    return weight, b


if __name__ == "__main__":
    # Small synthetic problem: N=256 nodes, F_in=64, F_out=32.
    N, F_IN, F_OUT = 256, 64, 32

    key = jax.random.PRNGKey(0)
    k_x, k_adj, k_p = jax.random.split(key, 3)

    x = jax.random.normal(k_x, (N, F_IN), dtype=jnp.float32)

    # Symmetric row-normalized adjacency-like dense matrix.
    a = jax.random.uniform(k_adj, (N, N), dtype=jnp.float32)
    a = (a > 0.9).astype(jnp.float32)
    a = a + a.T + jnp.eye(N, dtype=jnp.float32)
    adj = a / jnp.sum(a, axis=1, keepdims=True)

    weight, bias = init_params(k_p, F_IN, F_OUT, bias=True)

    # Reference in plain JAX (mirrors torch.mm / torch.spmm / + bias).
    sup_ref = jnp.dot(x, weight, precision="highest")
    ref = jnp.dot(adj, sup_ref, precision="highest") + bias[None, :]
    ref_nb = jnp.dot(adj, sup_ref, precision="highest")

    # f32 streaming: tight check against the f32 reference.
    out_f32 = jax.block_until_ready(
        graph_convolution(x, adj, weight, bias, stream_dtype=jnp.float32))
    assert out_f32.shape == (N, F_OUT)
    assert jnp.allclose(out_f32, ref, atol=2e-3, rtol=2e-3), (
        float(jnp.max(jnp.abs(out_f32 - ref))))

    # bf16 streaming: adj cached in bf16 ONCE at "setup" (amortized across
    # forward calls); support comes out of stage 1 already in bf16.
    adj_bf16 = adj.astype(jnp.bfloat16)
    out_bf16 = jax.block_until_ready(
        graph_convolution(x, adj_bf16, weight, bias, stream_dtype=jnp.bfloat16))
    assert jnp.allclose(out_bf16, ref, atol=3e-2, rtol=3e-2), (
        float(jnp.max(jnp.abs(out_bf16 - ref))))

    # bias=None path (no bias input, no bias add).
    out_nb = jax.block_until_ready(
        graph_convolution(x, adj, weight, None, stream_dtype=jnp.float32))
    assert jnp.allclose(out_nb, ref_nb, atol=2e-3, rtol=2e-3), (
        float(jnp.max(jnp.abs(out_nb - ref_nb))))

    # Contraction-tiled stage-2 path (used automatically when the resident
    # support slab no longer fits VMEM, e.g. large N*F_out on v7x) — forced
    # here via tile_cols to exercise the accumulator/finalize logic.
    out_kt = jax.block_until_ready(
        graph_convolution(x, adj, weight, bias, stream_dtype=jnp.float32,
                          tile_rows=128, tile_cols=128))
    assert jnp.allclose(out_kt, ref, atol=2e-3, rtol=2e-3), (
        float(jnp.max(jnp.abs(out_kt - ref))))

    print("KERNEL_OK")
</pallas_src>

<mosaic_0001>
module attributes {stable_mosaic.version = 11 : i64} {
  func.func @_support_kernel(%arg0: i32, %arg1: memref<256x64xf32, #tpu.memory_space<vmem>>, %arg2: memref<64x32xf32, #tpu.memory_space<vmem>>, %arg3: memref<256x32xf32, #tpu.memory_space<vmem>>) attributes {dimension_semantics = [#tpu.dimension_semantics<parallel>], iteration_bounds = array<i64: 1>, scalar_prefetch = 0 : i64, scratch_operands = 0 : i64, tpu.core_type = #tpu.core_type<tc>, window_params = [{transform_indices = @transform_0, window_bounds = array<i64: 256, 64>}, {pipeline_mode = #tpu.pipeline_mode<synchronous>, transform_indices = @transform_1, window_bounds = array<i64: 64, 32>}, {transform_indices = @transform_2, window_bounds = array<i64: 256, 32>}]} {
    %c0 = arith.constant 0 : index
    %c0_0 = arith.constant 0 : index
    %0 = vector.load %arg1[%c0, %c0_0] : memref<256x64xf32, #tpu.memory_space<vmem>>, vector<256x64xf32>
    %c0_1 = arith.constant 0 : index
    %c0_2 = arith.constant 0 : index
    %1 = vector.load %arg2[%c0_1, %c0_2] : memref<64x32xf32, #tpu.memory_space<vmem>>, vector<64x32xf32>
    %cst = arith.constant dense<0.000000e+00> : vector<256x32xf32>
    %2 = tpu.matmul %0, %1, %cst {dimension_numbers = #tpu.dot_dimension_numbers<[1], [0], [0], [1], [0, 0, 1, 1], [], []>} : vector<256x64xf32>, vector<64x32xf32>, vector<256x32xf32> -> vector<256x32xf32>
    %c0_3 = arith.constant 0 : index
    %c0_4 = arith.constant 0 : index
    %3 = vector.load %arg3[%c0_3, %c0_4] : memref<256x32xf32, #tpu.memory_space<vmem>>, vector<256x32xf32>
    tpu.vector_store %arg3[%c0_3, %c0_4], %2 {strides = array<i32>} : memref<256x32xf32, #tpu.memory_space<vmem>>, vector<256x32xf32>,
    return
  }
  func.func @transform_0(%arg0: i32) -> (i32, i32) {
    %c0_i32 = arith.constant 0 : i32
    %c0_i32_0 = arith.constant 0 : i32
    return %arg0, %c0_i32 : i32, i32
  }
  func.func @transform_1(%arg0: i32) -> (i32, i32) {
    %c0_i32 = arith.constant 0 : i32
    %c0_i32_0 = arith.constant 0 : i32
    %c0_i32_1 = arith.constant 0 : i32
    return %c0_i32, %c0_i32_0 : i32, i32
  }
  func.func @transform_2(%arg0: i32) -> (i32, i32) {
    %c0_i32 = arith.constant 0 : i32
    %c0_i32_0 = arith.constant 0 : i32
    return %arg0, %c0_i32 : i32, i32
  }
}

module attributes {stable_mosaic.version = 11 : i64} {
  func.func @_support_kernel(%arg0: i32, %arg1: memref<256x64xf32, #tpu.memory_space<vmem>>, %arg2: memref<64x32xf32, #tpu.memory_space<vmem>>, %arg3: memref<256x32xf32, #tpu.memory_space<vmem>>) attributes {dimension_semantics = [#tpu.dimension_semantics<parallel>], iteration_bounds = array<i64: 1>, scalar_prefetch = 0 : i64, scratch_operands = 0 : i64, tpu.core_type = #tpu.core_type<tc>, window_params = [{transform_indices = @transform_0, window_bounds = array<i64: 256, 64>}, {pipeline_mode = #tpu.pipeline_mode<synchronous>, transform_indices = @transform_1, window_bounds = array<i64: 64, 32>}, {transform_indices = @transform_2, window_bounds = array<i64: 256, 32>}]} {
    %c0 = arith.constant 0 : index
    %c0_0 = arith.constant 0 : index
    %0 = vector.load %arg1[%c0, %c0_0] : memref<256x64xf32, #tpu.memory_space<vmem>>, vector<256x64xf32>
    %c0_1 = arith.constant 0 : index
    %c0_2 = arith.constant 0 : index
    %1 = vector.load %arg2[%c0_1, %c0_2] : memref<64x32xf32, #tpu.memory_space<vmem>>, vector<64x32xf32>
    %cst = arith.constant dense<0.000000e+00> : vector<256x32xf32>
    %2 = tpu.matmul %0, %1, %cst {dimension_numbers = #tpu.dot_dimension_numbers<[1], [0], [0], [1], [0, 0, 1, 1], [], []>} : vector<256x64xf32>, vector<64x32xf32>, vector<256x32xf32> -> vector<256x32xf32>
    %c0_3 = arith.constant 0 : index
    %c0_4 = arith.constant 0 : index
    %3 = vector.load %arg3[%c0_3, %c0_4] : memref<256x32xf32, #tpu.memory_space<vmem>>, vector<256x32xf32>
    tpu.vector_store %arg3[%c0_3, %c0_4], %2 {strides = array<i32>} : memref<256x32xf32, #tpu.memory_space<vmem>>, vector<256x32xf32>,
    return
  }
  func.func @transform_0(%arg0: i32) -> (i32, i32) {
    %c0_i32 = arith.constant 0 : i32
    %c0_i32_0 = arith.constant 0 : i32
    return %arg0, %c0_i32 : i32, i32
  }
  func.func @transform_1(%arg0: i32) -> (i32, i32) {
    %c0_i32 = arith.constant 0 : i32
    %c0_i32_0 = arith.constant 0 : i32
    %c0_i32_1 = arith.constant 0 : i32
    return %c0_i32, %c0_i32_0 : i32, i32
  }
  func.func @transform_2(%arg0: i32) -> (i32, i32) {
    %c0_i32 = arith.constant 0 : i32
    %c0_i32_0 = arith.constant 0 : i32
    return %arg0, %c0_i32 : i32, i32
  }
}

</mosaic_0001>

<llo_original>
// kernel: tpu_custom_call.1
$region0: #{tpu_custom_call.1}
  #allocation0 [shape = 'u32[]', space=smem, size = 0x4, offset = 0x4, fixed_abs, tag = 'smem constant byte address 0x4 - core index']
  #allocation1 [shape = 'u32[144,128]{1,0:T(1,128)}', space=vmem, size = 0x12000, scoped, tag = 'internal scratch']
  %s0 = inlined_call_operand.vmem [shape: f32[256,64], index: 0, kind: input, shape index: {}]
  %s1 = inlined_call_operand.vmem [shape: f32[64,32], index: 1, kind: input, shape index: {}]
  %s2 = inlined_call_operand.vmem [shape: f32[256,32], index: 2, kind: output, shape index: {}]
  %s3 = sld [smem:[#allocation0]]
  $region18: #{tpu_custom_call.1} parent=0
    _
  %s5 = ssub.s32 1, %s3
  %s6 = scalar_select 0, %s5, %s3
  // Predicated region
  $region2: #{tpu_custom_call.1} parent=0 // pred_check
    _
  $region3: #{tpu_custom_call.1} parent=0 // pred_check_branch
    %8 = sbr.rel (0) target = $region5
  $region4: #{tpu_custom_call.1} parent=0 // pred_region
    _
  $region5: #{tpu_custom_call.1} parent=0 // pred_fallthru
    _
  // Predicated region
  $region6: #{tpu_custom_call.1} parent=0 // pred_check
    _
  $region7: #{tpu_custom_call.1} parent=0 // pred_check_branch
    %10 = sbr.rel (0) target = $region9
  $region8: #{tpu_custom_call.1} parent=0 // pred_region
    _
  $region9: #{tpu_custom_call.1} parent=0 // pred_fallthru
    _
  %v11 = vld [vmem:[%s0] sm:$0xff]
  %v12 = vld [vmem:[%s0 + $0x8] sm:$0xff]
  %v13 = vld [vmem:[%s0 + $0x10] sm:$0xff]
  %v14 = vld [vmem:[%s0 + $0x18] sm:$0xff]
  %v15 = vld [vmem:[%s0 + $0x20] sm:$0xff]
  %v16 = vld [vmem:[%s0 + $0x28] sm:$0xff]
  %v17 = vld [vmem:[%s0 + $0x30] sm:$0xff]
  %v18 = vld [vmem:[%s0 + $0x38] sm:$0xff]
  %v19 = vld [vmem:[%s0 + $0x40] sm:$0xff]
  %v20 = vld [vmem:[%s0 + $0x48] sm:$0xff]
  %v21 = vld [vmem:[%s0 + $0x50] sm:$0xff]
  %v22 = vld [vmem:[%s0 + $0x58] sm:$0xff]
  %v23 = vld [vmem:[%s0 + $0x60] sm:$0xff]
  %v24 = vld [vmem:[%s0 + $0x68] sm:$0xff]
  %v25 = vld [vmem:[%s0 + $0x70] sm:$0xff]
  %v26 = vld [vmem:[%s0 + $0x78] sm:$0xff]
  %v27 = vld [vmem:[%s0 + $0x80] sm:$0xff]
  %v28 = vld [vmem:[%s0 + $0x88] sm:$0xff]
  %v29 = vld [vmem:[%s0 + $0x90] sm:$0xff]
  %v30 = vld [vmem:[%s0 + $0x98] sm:$0xff]
  %v31 = vld [vmem:[%s0 + $0xa0] sm:$0xff]
  %v32 = vld [vmem:[%s0 + $0xa8] sm:$0xff]
  %v33 = vld [vmem:[%s0 + $0xb0] sm:$0xff]
  %v34 = vld [vmem:[%s0 + $0xb8] sm:$0xff]
  %v35 = vld [vmem:[%s0 + $0xc0] sm:$0xff]
  %v36 = vld [vmem:[%s0 + $0xc8] sm:$0xff]
  %v37 = vld [vmem:[%s0 + $0xd0] sm:$0xff]
  %v38 = vld [vmem:[%s0 + $0xd8] sm:$0xff]
  %v39 = vld [vmem:[%s0 + $0xe0] sm:$0xff]
  %v40 = vld [vmem:[%s0 + $0xe8] sm:$0xff]
  %v41 = vld [vmem:[%s0 + $0xf0] sm:$0xff]
  %v42 = vld [vmem:[%s0 + $0xf8] sm:$0xff]
  %v43 = vld [vmem:[%s1] sm:$0xff]
  %v44 = vld [vmem:[%s1 + $0x8] sm:$0xff]
  %v45 = vld [vmem:[%s1 + $0x10] sm:$0xff]
  %v46 = vld [vmem:[%s1 + $0x18] sm:$0xff]
  %v47 = vld [vmem:[%s1 + $0x20] sm:$0xff]
  %v48 = vld [vmem:[%s1 + $0x28] sm:$0xff]
  %v49 = vld [vmem:[%s1 + $0x30] sm:$0xff]
  %v50 = vld [vmem:[%s1 + $0x38] sm:$0xff]
  %vm51 = vcmask 523264
  %v53 = vsel %vm51, %v11, 0
  %v56 = vsel %vm51, %v12, 0
  %v59 = vsel %vm51, %v13, 0
  %v62 = vsel %vm51, %v14, 0
  %v65 = vsel %vm51, %v15, 0
  %v68 = vsel %vm51, %v16, 0
  %v71 = vsel %vm51, %v17, 0
  %v74 = vsel %vm51, %v18, 0
  %v77 = vsel %vm51, %v19, 0
  %v80 = vsel %vm51, %v20, 0
  %v83 = vsel %vm51, %v21, 0
  %v86 = vsel %vm51, %v22, 0
  %v89 = vsel %vm51, %v23, 0
  %v92 = vsel %vm51, %v24, 0
  %v95 = vsel %vm51, %v25, 0
  %v98 = vsel %vm51, %v26, 0
  %v101 = vsel %vm51, %v27, 0
  %v104 = vsel %vm51, %v28, 0
  %v107 = vsel %vm51, %v29, 0
  %v110 = vsel %vm51, %v30, 0
  %v113 = vsel %vm51, %v31, 0
  %v116 = vsel %vm51, %v32, 0
  %v119 = vsel %vm51, %v33, 0
  %v122 = vsel %vm51, %v34, 0
  %v125 = vsel %vm51, %v35, 0
  %v128 = vsel %vm51, %v36, 0
  %v131 = vsel %vm51, %v37, 0
  %v134 = vsel %vm51, %v38, 0
  %v137 = vsel %vm51, %v39, 0
  %v140 = vsel %vm51, %v40, 0
  %v143 = vsel %vm51, %v41, 0
  %v146 = vsel %vm51, %v42, 0
  %148 = vmatprep.subr.mxu0 0.0
  %149 = vmatpush1.msra.mxu0 %v43
  %150 = vmatprep.subr.mxu0 0.0
  %151 = vmatpush1.msra.mxu0 %v44
  %152 = vmatprep.subr.mxu0 0.0
  %153 = vmatpush1.msra.mxu0 %v45
  %154 = vmatprep.subr.mxu0 0.0
  %155 = vmatpush1.msra.mxu0 %v46
  %156 = vmatprep.subr.mxu0 0.0
  %157 = vmatpush1.msra.mxu0 %v47
  %158 = vmatprep.subr.mxu0 0.0
  %159 = vmatpush1.msra.mxu0 %v48
  %160 = vmatprep.subr.mxu0 0.0
  %161 = vmatpush1.msra.mxu0 %v49
  %162 = vmatprep.subr.mxu0 0.0
  %163 = vmatpush1.msra.mxu0 %v50
  %164 = vmatprep.subr.mxu0 0.0
  %165 = vmatpush1.msra.mxu0 0.0
  %166 = vmatprep.subr.mxu0 0.0
  %167 = vmatpush1.msra.mxu0 0.0
  %168 = vmatprep.subr.mxu0 0.0
  %169 = vmatpush1.msra.mxu0 0.0
  %170 = vmatprep.subr.mxu0 0.0
  %171 = vmatpush1.msra.mxu0 0.0
  %172 = vmatprep.subr.mxu0 0.0
  %173 = vmatpush1.msra.mxu0 0.0
  %174 = vmatprep.subr.mxu0 0.0
  %175 = vmatpush1.msra.mxu0 0.0
  %176 = vmatprep.subr.mxu0 0.0
  %177 = vmatpush1.msra.mxu0 0.0
  %178 = vmatprep.subr.mxu0 0.0
  %179 = vmatpush1.msra.mxu0 0.0
  %180 = vmatprep.subr.mxu0 0.0
  %181 = vmatpush1.msra.mxu0 0.0
  %182 = vmatprep.subr.mxu0 0.0
  %183 = vmatpush1.msra.mxu0 0.0
  %184 = vmatprep.subr.mxu0 0.0
  %185 = vmatpush1.msra.mxu0 0.0
  %186 = vmatprep.subr.mxu0 0.0
  %187 = vmatpush1.msra.mxu0 0.0
  %188 = vmatprep.subr.mxu0 0.0
  %189 = vmatpush1.msra.mxu0 0.0
  %190 = vmatprep.subr.mxu0 0.0
  %191 = vmatpush1.msra.mxu0 0.0
  %192 = vmatprep.subr.mxu0 0.0
  %193 = vmatpush1.msra.mxu0 0.0
  %194 = vmatprep.subr.mxu0 0.0
  %195 = vmatpush1.msra.mxu0 0.0
  %196 = vmatprep.subr.mxu0 0.0
  %197 = vmatpush1.msra.mxu0 0.0
  %198 = vmatprep.subr.mxu0 0.0
  %199 = vmatpush1.msra.mxu0 0.0
  %200 = vmatprep.subr.mxu0 0.0
  %201 = vmatpush1.msra.mxu0 0.0
  %202 = vmatprep.subr.mxu0 0.0
  %203 = vmatpush1.msra.mxu0 0.0
  %204 = vmatprep.subr.mxu0 0.0
  %205 = vmatpush1.msra.mxu0 0.0
  %206 = vmatprep.subr.mxu0 0.0
  %207 = vmatpush1.msra.mxu0 0.0
  %208 = vmatprep.subr.mxu0 0.0
  %209 = vmatpush1.msra.mxu0 0.0
  %210 = vmatprep.subr.mxu0 0.0
  %211 = vmatpush1.msra.mxu0 0.0
  %212 = vmatprep.mubr.f32.mxu0 0.0
  %213 = vmatmul.mubr.f32.gmra.mrb[0].mxu0 %v53
  %v214 = vpop.f32.mrb[0].mxu0
  %v215 = vadd.f32 0.0, %v214
  %v216 = vpop.f32.mrb[0].mxu0
  %217 = vmatprep.mubr.f32.mxu0 0.0
  %218 = vmatmul.mubr.f32.gmra.mrb[0].mxu0 %v56
  %v219 = vpop.f32.mrb[0].mxu0
  %v220 = vadd.f32 0.0, %v219
  %v221 = vpop.f32.mrb[0].mxu0
  %222 = vmatprep.mubr.f32.mxu0 0.0
  %223 = vmatmul.mubr.f32.gmra.mrb[0].mxu0 %v59
  %v224 = vpop.f32.mrb[0].mxu0
  %v225 = vadd.f32 0.0, %v224
  %v226 = vpop.f32.mrb[0].mxu0
  %227 = vmatprep.mubr.f32.mxu0 0.0
  %228 = vmatmul.mubr.f32.gmra.mrb[0].mxu0 %v62
  %v229 = vpop.f32.mrb[0].mxu0
  %v230 = vadd.f32 0.0, %v229
  %v231 = vpop.f32.mrb[0].mxu0
  %232 = vmatprep.mubr.f32.mxu0 0.0
  %233 = vmatmul.mubr.f32.gmra.mrb[0].mxu0 %v65
  %v234 = vpop.f32.mrb[0].mxu0
  %v235 = vadd.f32 0.0, %v234
  %v236 = vpop.f32.mrb[0].mxu0
  %237 = vmatprep.mubr.f32.mxu0 0.0
  %238 = vmatmul.mubr.f32.gmra.mrb[0].mxu0 %v68
  %v239 = vpop.f32.mrb[0].mxu0
  %v240 = vadd.f32 0.0, %v239
  %v241 = vpop.f32.mrb[0].mxu0
  %242 = vmatprep.mubr.f32.mxu0 0.0
  %243 = vmatmul.mubr.f32.gmra.mrb[0].mxu0 %v71
  %v244 = vpop.f32.mrb[0].mxu0
  %v245 = vadd.f32 0.0, %v244
  %v246 = vpop.f32.mrb[0].mxu0
  %247 = vmatprep.mubr.f32.mxu0 0.0
  %248 = vmatmul.mubr.f32.gmra.mrb[0].mxu0 %v74
  %v249 = vpop.f32.mrb[0].mxu0
  %v250 = vadd.f32 0.0, %v249
  %v251 = vpop.f32.mrb[0].mxu0
  %252 = vmatprep.mubr.f32.mxu0 0.0
  %253 = vmatmul.mubr.f32.gmra.mrb[0].mxu0 %v77
  %v254 = vpop.f32.mrb[0].mxu0
  %v255 = vadd.f32 0.0, %v254
  %v256 = vpop.f32.mrb[0].mxu0
  %257 = vmatprep.mubr.f32.mxu0 0.0
  %258 = vmatmul.mubr.f32.gmra.mrb[0].mxu0 %v80
  %v259 = vpop.f32.mrb[0].mxu0
  %v260 = vadd.f32 0.0, %v259
  %v261 = vpop.f32.mrb[0].mxu0
  %262 = vmatprep.mubr.f32.mxu0 0.0
  %263 = vmatmul.mubr.f32.gmra.mrb[0].mxu0 %v83
  %v264 = vpop.f32.mrb[0].mxu0
  %v265 = vadd.f32 0.0, %v264
  %v266 = vpop.f32.mrb[0].mxu0
  %267 = vmatprep.mubr.f32.mxu0 0.0
  %268 = vmatmul.mubr.f32.gmra.mrb[0].mxu0 %v86
  %v269 = vpop.f32.mrb[0].mxu0
  %v270 = vadd.f32 0.0, %v269
  %v271 = vpop.f32.mrb[0].mxu0
  %272 = vmatprep.mubr.f32.mxu0 0.0
  %273 = vmatmul.mubr.f32.gmra.mrb[0].mxu0 %v89
  %v274 = vpop.f32.mrb[0].mxu0
  %v275 = vadd.f32 0.0, %v274
  %v276 = vpop.f32.mrb[0].mxu0
  %277 = vmatprep.mubr.f32.mxu0 0.0
  %278 = vmatmul.mubr.f32.gmra.mrb[0].mxu0 %v92
  %v279 = vpop.f32.mrb[0].mxu0
  %v280 = vadd.f32 0.0, %v279
  %v281 = vpop.f32.mrb[0].mxu0
  %282 = vmatprep.mubr.f32.mxu0 0.0
  %283 = vmatmul.mubr.f32.gmra.mrb[0].mxu0 %v95
  %v284 = vpop.f32.mrb[0].mxu0
  %v285 = vadd.f32 0.0, %v284
  %v286 = vpop.f32.mrb[0].mxu0
  %287 = vmatprep.mubr.f32.mxu0 0.0
  %288 = vmatmul.mubr.f32.gmra.mrb[0].mxu0 %v98
  %v289 = vpop.f32.mrb[0].mxu0
  %v290 = vadd.f32 0.0, %v289
  %v291 = vpop.f32.mrb[0].mxu0
  %292 = vmatprep.mubr.f32.mxu0 0.0
  %293 = vmatmul.mubr.f32.gmra.mrb[0].mxu0 %v101
  %v294 = vpop.f32.mrb[0].mxu0
  %v295 = vadd.f32 0.0, %v294
  %v296 = vpop.f32.mrb[0].mxu0
  %297 = vmatprep.mubr.f32.mxu0 0.0
  %298 = vmatmul.mubr.f32.gmra.mrb[0].mxu0 %v104
  %v299 = vpop.f32.mrb[0].mxu0
  %v300 = vadd.f32 0.0, %v299
  %v301 = vpop.f32.mrb[0].mxu0
  %302 = vmatprep.mubr.f32.mxu0 0.0
  %303 = vmatmul.mubr.f32.gmra.mrb[0].mxu0 %v107
  %v304 = vpop.f32.mrb[0].mxu0
  %v305 = vadd.f32 0.0, %v304
  %v306 = vpop.f32.mrb[0].mxu0
  %307 = vmatprep.mubr.f32.mxu0 0.0
  %308 = vmatmul.mubr.f32.gmra.mrb[0].mxu0 %v110
  %v309 = vpop.f32.mrb[0].mxu0
  %v310 = vadd.f32 0.0, %v309
  %v311 = vpop.f32.mrb[0].mxu0
  %312 = vmatprep.mubr.f32.mxu0 0.0
  %313 = vmatmul.mubr.f32.gmra.mrb[0].mxu0 %v113
  %v314 = vpop.f32.mrb[0].mxu0
  %v315 = vadd.f32 0.0, %v314
  %v316 = vpop.f32.mrb[0].mxu0
  %317 = vmatprep.mubr.f32.mxu0 0.0
  %318 = vmatmul.mubr.f32.gmra.mrb[0].mxu0 %v116
  %v319 = vpop.f32.mrb[0].mxu0
  %v320 = vadd.f32 0.0, %v319
  %v321 = vpop.f32.mrb[0].mxu0
  %322 = vmatprep.mubr.f32.mxu0 0.0
  %323 = vmatmul.mubr.f32.gmra.mrb[0].mxu0 %v119
  %v324 = vpop.f32.mrb[0].mxu0
  %v325 = vadd.f32 0.0, %v324
  %v326 = vpop.f32.mrb[0].mxu0
  %327 = vmatprep.mubr.f32.mxu0 0.0
  %328 = vmatmul.mubr.f32.gmra.mrb[0].mxu0 %v122
  %v329 = vpop.f32.mrb[0].mxu0
  %v330 = vadd.f32 0.0, %v329
  %v331 = vpop.f32.mrb[0].mxu0
  %332 = vmatprep.mubr.f32.mxu0 0.0
  %333 = vmatmul.mubr.f32.gmra.mrb[0].mxu0 %v125
  %v334 = vpop.f32.mrb[0].mxu0
  %v335 = vadd.f32 0.0, %v334
  %v336 = vpop.f32.mrb[0].mxu0
  %337 = vmatprep.mubr.f32.mxu0 0.0
  %338 = vmatmul.mubr.f32.gmra.mrb[0].mxu0 %v128
  %v339 = vpop.f32.mrb[0].mxu0
  %v340 = vadd.f32 0.0, %v339
  %v341 = vpop.f32.mrb[0].mxu0
  %342 = vmatprep.mubr.f32.mxu0 0.0
  %343 = vmatmul.mubr.f32.gmra.mrb[0].mxu0 %v131
  %v344 = vpop.f32.mrb[0].mxu0
  %v345 = vadd.f32 0.0, %v344
  %v346 = vpop.f32.mrb[0].mxu0
  %347 = vmatprep.mubr.f32.mxu0 0.0
  %348 = vmatmul.mubr.f32.gmra.mrb[0].mxu0 %v134
  %v349 = vpop.f32.mrb[0].mxu0
  %v350 = vadd.f32 0.0, %v349
  %v351 = vpop.f32.mrb[0].mxu0
  %352 = vmatprep.mubr.f32.mxu0 0.0
  %353 = vmatmul.mubr.f32.gmra.mrb[0].mxu0 %v137
  %v354 = vpop.f32.mrb[0].mxu0
  %v355 = vadd.f32 0.0, %v354
  %v356 = vpop.f32.mrb[0].mxu0
  %357 = vmatprep.mubr.f32.mxu0 0.0
  %358 = vmatmul.mubr.f32.gmra.mrb[0].mxu0 %v140
  %v359 = vpop.f32.mrb[0].mxu0
  %v360 = vadd.f32 0.0, %v359
  %v361 = vpop.f32.mrb[0].mxu0
  %362 = vmatprep.mubr.f32.mxu0 0.0
  %363 = vmatmul.mubr.f32.gmra.mrb[0].mxu0 %v143
  %v364 = vpop.f32.mrb[0].mxu0
  %v365 = vadd.f32 0.0, %v364
  %v366 = vpop.f32.mrb[0].mxu0
  %367 = vmatprep.mubr.f32.mxu0 0.0
  %368 = vmatmul.mubr.f32.gmra.mrb[0].mxu0 %v146
  %v369 = vpop.f32.mrb[0].mxu0
  %v370 = vadd.f32 0.0, %v369
  %v371 = vpop.f32.mrb[0].mxu0
  %372 = vdwg.mxu0
  %vm373 = vcmask 261120
  %374 = vst.msk [vmem:[%s2] sm:$0xff] %vm373, %v215
  %375 = vst.msk [vmem:[%s2 + $0x8] sm:$0xff] %vm373, %v220
  %376 = vst.msk [vmem:[%s2 + $0x10] sm:$0xff] %vm373, %v225
  %377 = vst.msk [vmem:[%s2 + $0x18] sm:$0xff] %vm373, %v230
  %378 = vst.msk [vmem:[%s2 + $0x20] sm:$0xff] %vm373, %v235
  %379 = vst.msk [vmem:[%s2 + $0x28] sm:$0xff] %vm373, %v240
  %380 = vst.msk [vmem:[%s2 + $0x30] sm:$0xff] %vm373, %v245
  %381 = vst.msk [vmem:[%s2 + $0x38] sm:$0xff] %vm373, %v250
  %382 = vst.msk [vmem:[%s2 + $0x40] sm:$0xff] %vm373, %v255
  %383 = vst.msk [vmem:[%s2 + $0x48] sm:$0xff] %vm373, %v260
  %384 = vst.msk [vmem:[%s2 + $0x50] sm:$0xff] %vm373, %v265
  %385 = vst.msk [vmem:[%s2 + $0x58] sm:$0xff] %vm373, %v270
  %386 = vst.msk [vmem:[%s2 + $0x60] sm:$0xff] %vm373, %v275
  %387 = vst.msk [vmem:[%s2 + $0x68] sm:$0xff] %vm373, %v280
  %388 = vst.msk [vmem:[%s2 + $0x70] sm:$0xff] %vm373, %v285
  %389 = vst.msk [vmem:[%s2 + $0x78] sm:$0xff] %vm373, %v290
  %390 = vst.msk [vmem:[%s2 + $0x80] sm:$0xff] %vm373, %v295
  %391 = vst.msk [vmem:[%s2 + $0x88] sm:$0xff] %vm373, %v300
  %392 = vst.msk [vmem:[%s2 + $0x90] sm:$0xff] %vm373, %v305
  %393 = vst.msk [vmem:[%s2 + $0x98] sm:$0xff] %vm373, %v310
  %394 = vst.msk [vmem:[%s2 + $0xa0] sm:$0xff] %vm373, %v315
  %395 = vst.msk [vmem:[%s2 + $0xa8] sm:$0xff] %vm373, %v320
  %396 = vst.msk [vmem:[%s2 + $0xb0] sm:$0xff] %vm373, %v325
  %397 = vst.msk [vmem:[%s2 + $0xb8] sm:$0xff] %vm373, %v330
  %398 = vst.msk [vmem:[%s2 + $0xc0] sm:$0xff] %vm373, %v335
  %399 = vst.msk [vmem:[%s2 + $0xc8] sm:$0xff] %vm373, %v340
  %400 = vst.msk [vmem:[%s2 + $0xd0] sm:$0xff] %vm373, %v345
  %401 = vst.msk [vmem:[%s2 + $0xd8] sm:$0xff] %vm373, %v350
  %402 = vst.msk [vmem:[%s2 + $0xe0] sm:$0xff] %vm373, %v355
  %403 = vst.msk [vmem:[%s2 + $0xe8] sm:$0xff] %vm373, %v360
  %404 = vst.msk [vmem:[%s2 + $0xf0] sm:$0xff] %vm373, %v365
  %405 = vst.msk [vmem:[%s2 + $0xf8] sm:$0xff] %vm373, %v370
  // Predicated region
  $region10: #{tpu_custom_call.1} parent=0 // pred_check
    _
  $region11: #{tpu_custom_call.1} parent=0 // pred_check_branch
    %407 = sbr.rel (0) target = $region13
  $region12: #{tpu_custom_call.1} parent=0 // pred_region
    _
  $region13: #{tpu_custom_call.1} parent=0 // pred_fallthru
    _
  // Predicated region
  $region14: #{tpu_custom_call.1} parent=0 // pred_check
    _
  $region15: #{tpu_custom_call.1} parent=0 // pred_check_branch
    %409 = sbr.rel (0) target = $region17
  $region16: #{tpu_custom_call.1} parent=0 // pred_region
    _
  $region17: #{tpu_custom_call.1} parent=0 // pred_fallthru
    _

// kernel: tpu_custom_call.1
$region0: #{tpu_custom_call.1}
  #allocation0 [shape = 'u32[]', space=smem, size = 0x4, offset = 0x4, fixed_abs, tag = 'smem constant byte address 0x4 - core index']
  #allocation1 [shape = 'u32[144,128]{1,0:T(1,128)}', space=vmem, size = 0x12000, scoped, tag = 'internal scratch']
  %s0 = inlined_call_operand.vmem [shape: f32[256,64], index: 0, kind: input, shape index: {}]
  %s1 = inlined_call_operand.vmem [shape: f32[64,32], index: 1, kind: input, shape index: {}]
  %s2 = inlined_call_operand.vmem [shape: f32[256,32], index: 2, kind: output, shape index: {}]
  %s3 = sld [smem:[#allocation0]]
  $region18: #{tpu_custom_call.1} parent=0
    _
  %s5 = ssub.s32 1, %s3
  %s6 = scalar_select 0, %s5, %s3
  // Predicated region
  $region2: #{tpu_custom_call.1} parent=0 // pred_check
    _
  $region3: #{tpu_custom_call.1} parent=0 // pred_check_branch
    %8 = sbr.rel (0) target = $region5
  $region4: #{tpu_custom_call.1} parent=0 // pred_region
    _
  $region5: #{tpu_custom_call.1} parent=0 // pred_fallthru
    _
  // Predicated region
  $region6: #{tpu_custom_call.1} parent=0 // pred_check
    _
  $region7: #{tpu_custom_call.1} parent=0 // pred_check_branch
    %10 = sbr.rel (0) target = $region9
  $region8: #{tpu_custom_call.1} parent=0 // pred_region
    _
  $region9: #{tpu_custom_call.1} parent=0 // pred_fallthru
    _
  %v11 = vld [vmem:[%s0] sm:$0xff]
  %v12 = vld [vmem:[%s0 + $0x8] sm:$0xff]
  %v13 = vld [vmem:[%s0 + $0x10] sm:$0xff]
  %v14 = vld [vmem:[%s0 + $0x18] sm:$0xff]
  %v15 = vld [vmem:[%s0 + $0x20] sm:$0xff]
  %v16 = vld [vmem:[%s0 + $0x28] sm:$0xff]
  %v17 = vld [vmem:[%s0 + $0x30] sm:$0xff]
  %v18 = vld [vmem:[%s0 + $0x38] sm:$0xff]
  %v19 = vld [vmem:[%s0 + $0x40] sm:$0xff]
  %v20 = vld [vmem:[%s0 + $0x48] sm:$0xff]
  %v21 = vld [vmem:[%s0 + $0x50] sm:$0xff]
  %v22 = vld [vmem:[%s0 + $0x58] sm:$0xff]
  %v23 = vld [vmem:[%s0 + $0x60] sm:$0xff]
  %v24 = vld [vmem:[%s0 + $0x68] sm:$0xff]
  %v25 = vld [vmem:[%s0 + $0x70] sm:$0xff]
  %v26 = vld [vmem:[%s0 + $0x78] sm:$0xff]
  %v27 = vld [vmem:[%s0 + $0x80] sm:$0xff]
  %v28 = vld [vmem:[%s0 + $0x88] sm:$0xff]
  %v29 = vld [vmem:[%s0 + $0x90] sm:$0xff]
  %v30 = vld [vmem:[%s0 + $0x98] sm:$0xff]
  %v31 = vld [vmem:[%s0 + $0xa0] sm:$0xff]
  %v32 = vld [vmem:[%s0 + $0xa8] sm:$0xff]
  %v33 = vld [vmem:[%s0 + $0xb0] sm:$0xff]
  %v34 = vld [vmem:[%s0 + $0xb8] sm:$0xff]
  %v35 = vld [vmem:[%s0 + $0xc0] sm:$0xff]
  %v36 = vld [vmem:[%s0 + $0xc8] sm:$0xff]
  %v37 = vld [vmem:[%s0 + $0xd0] sm:$0xff]
  %v38 = vld [vmem:[%s0 + $0xd8] sm:$0xff]
  %v39 = vld [vmem:[%s0 + $0xe0] sm:$0xff]
  %v40 = vld [vmem:[%s0 + $0xe8] sm:$0xff]
  %v41 = vld [vmem:[%s0 + $0xf0] sm:$0xff]
  %v42 = vld [vmem:[%s0 + $0xf8] sm:$0xff]
  %v43 = vld [vmem:[%s1] sm:$0xff]
  %v44 = vld [vmem:[%s1 + $0x8] sm:$0xff]
  %v45 = vld [vmem:[%s1 + $0x10] sm:$0xff]
  %v46 = vld [vmem:[%s1 + $0x18] sm:$0xff]
  %v47 = vld [vmem:[%s1 + $0x20] sm:$0xff]
  %v48 = vld [vmem:[%s1 + $0x28] sm:$0xff]
  %v49 = vld [vmem:[%s1 + $0x30] sm:$0xff]
  %v50 = vld [vmem:[%s1 + $0x38] sm:$0xff]
  %vm51 = vcmask 523264
  %v53 = vsel %vm51, %v11, 0
  %v56 = vsel %vm51, %v12, 0
  %v59 = vsel %vm51, %v13, 0
  %v62 = vsel %vm51, %v14, 0
  %v65 = vsel %vm51, %v15, 0
  %v68 = vsel %vm51, %v16, 0
  %v71 = vsel %vm51, %v17, 0
  %v74 = vsel %vm51, %v18, 0
  %v77 = vsel %vm51, %v19, 0
  %v80 = vsel %vm51, %v20, 0
  %v83 = vsel %vm51, %v21, 0
  %v86 = vsel %vm51, %v22, 0
  %v89 = vsel %vm51, %v23, 0
  %v92 = vsel %vm51, %v24, 0
  %v95 = vsel %vm51, %v25, 0
  %v98 = vsel %vm51, %v26, 0
  %v101 = vsel %vm51, %v27, 0
  %v104 = vsel %vm51, %v28, 0
  %v107 = vsel %vm51, %v29, 0
  %v110 = vsel %vm51, %v30, 0
  %v113 = vsel %vm51, %v31, 0
  %v116 = vsel %vm51, %v32, 0
  %v119 = vsel %vm51, %v33, 0
  %v122 = vsel %vm51, %v34, 0
  %v125 = vsel %vm51, %v35, 0
  %v128 = vsel %vm51, %v36, 0
  %v131 = vsel %vm51, %v37, 0
  %v134 = vsel %vm51, %v38, 0
  %v137 = vsel %vm51, %v39, 0
  %v140 = vsel %vm51, %v40, 0
  %v143 = vsel %vm51, %v41, 0
  %v146 = vsel %vm51, %v42, 0
  %148 = vmatprep.subr.mxu0 0.0
  %149 = vmatpush1.msra.mxu0 %v43
  %150 = vmatprep.subr.mxu0 0.0
  %151 = vmatpush1.msra.mxu0 %v44
  %152 = vmatprep.subr.mxu0 0.0
  %153 = vmatpush1.msra.mxu0 %v45
  %154 = vmatprep.subr.mxu0 0.0
  %155 = vmatpush1.msra.mxu0 %v46
  %156 = vmatprep.subr.mxu0 0.0
  %157 = vmatpush1.msra.mxu0 %v47
  %158 = vmatprep.subr.mxu0 0.0
  %159 = vmatpush1.msra.mxu0 %v48
  %160 = vmatprep.subr.mxu0 0.0
  %161 = vmatpush1.msra.mxu0 %v49
  %162 = vmatprep.subr.mxu0 0.0
  %163 = vmatpush1.msra.mxu0 %v50
  %164 = vmatprep.subr.mxu0 0.0
  %165 = vmatpush1.msra.mxu0 0.0
  %166 = vmatprep.subr.mxu0 0.0
  %167 = vmatpush1.msra.mxu0 0.0
  %168 = vmatprep.subr.mxu0 0.0
  %169 = vmatpush1.msra.mxu0 0.0
  %170 = vmatprep.subr.mxu0 0.0
  %171 = vmatpush1.msra.mxu0 0.0
  %172 = vmatprep.subr.mxu0 0.0
  %173 = vmatpush1.msra.mxu0 0.0
  %174 = vmatprep.subr.mxu0 0.0
  %175 = vmatpush1.msra.mxu0 0.0
  %176 = vmatprep.subr.mxu0 0.0
  %177 = vmatpush1.msra.mxu0 0.0
  %178 = vmatprep.subr.mxu0 0.0
  %179 = vmatpush1.msra.mxu0 0.0
  %180 = vmatprep.subr.mxu0 0.0
  %181 = vmatpush1.msra.mxu0 0.0
  %182 = vmatprep.subr.mxu0 0.0
  %183 = vmatpush1.msra.mxu0 0.0
  %184 = vmatprep.subr.mxu0 0.0
  %185 = vmatpush1.msra.mxu0 0.0
  %186 = vmatprep.subr.mxu0 0.0
  %187 = vmatpush1.msra.mxu0 0.0
  %188 = vmatprep.subr.mxu0 0.0
  %189 = vmatpush1.msra.mxu0 0.0
  %190 = vmatprep.subr.mxu0 0.0
  %191 = vmatpush1.msra.mxu0 0.0
  %192 = vmatprep.subr.mxu0 0.0
  %193 = vmatpush1.msra.mxu0 0.0
  %194 = vmatprep.subr.mxu0 0.0
  %195 = vmatpush1.msra.mxu0 0.0
  %196 = vmatprep.subr.mxu0 0.0
  %197 = vmatpush1.msra.mxu0 0.0
  %198 = vmatprep.subr.mxu0 0.0
  %199 = vmatpush1.msra.mxu0 0.0
  %200 = vmatprep.subr.mxu0 0.0
  %201 = vmatpush1.msra.mxu0 0.0
  %202 = vmatprep.subr.mxu0 0.0
  %203 = vmatpush1.msra.mxu0 0.0
  %204 = vmatprep.subr.mxu0 0.0
  %205 = vmatpush1.msra.mxu0 0.0
  %206 = vmatprep.subr.mxu0 0.0
  %207 = vmatpush1.msra.mxu0 0.0
  %208 = vmatprep.subr.mxu0 0.0
  %209 = vmatpush1.msra.mxu0 0.0
  %210 = vmatprep.subr.mxu0 0.0
  %211 = vmatpush1.msra.mxu0 0.0
  %212 = vmatprep.mubr.f32.mxu0 0.0
  %213 = vmatmul.mubr.f32.gmra.mrb[0].mxu0 %v53
  %v214 = vpop.f32.mrb[0].mxu0
  %v215 = vadd.f32 0.0, %v214
  %v216 = vpop.f32.mrb[0].mxu0
  %217 = vmatprep.mubr.f32.mxu0 0.0
  %218 = vmatmul.mubr.f32.gmra.mrb[0].mxu0 %v56
  %v219 = vpop.f32.mrb[0].mxu0
  %v220 = vadd.f32 0.0, %v219
  %v221 = vpop.f32.mrb[0].mxu0
  %222 = vmatprep.mubr.f32.mxu0 0.0
  %223 = vmatmul.mubr.f32.gmra.mrb[0].mxu0 %v59
  %v224 = vpop.f32.mrb[0].mxu0
  %v225 = vadd.f32 0.0, %v224
  %v226 = vpop.f32.mrb[0].mxu0
  %227 = vmatprep.mubr.f32.mxu0 0.0
  %228 = vmatmul.mubr.f32.gmra.mrb[0].mxu0 %v62
  %v229 = vpop.f32.mrb[0].mxu0
  %v230 = vadd.f32 0.0, %v229
  %v231 = vpop.f32.mrb[0].mxu0
  %232 = vmatprep.mubr.f32.mxu0 0.0
  %233 = vmatmul.mubr.f32.gmra.mrb[0].mxu0 %v65
  %v234 = vpop.f32.mrb[0].mxu0
  %v235 = vadd.f32 0.0, %v234
  %v236 = vpop.f32.mrb[0].mxu0
  %237 = vmatprep.mubr.f32.mxu0 0.0
  %238 = vmatmul.mubr.f32.gmra.mrb[0].mxu0 %v68
  %v239 = vpop.f32.mrb[0].mxu0
  %v240 = vadd.f32 0.0, %v239
  %v241 = vpop.f32.mrb[0].mxu0
  %242 = vmatprep.mubr.f32.mxu0 0.0
  %243 = vmatmul.mubr.f32.gmra.mrb[0].mxu0 %v71
  %v244 = vpop.f32.mrb[0].mxu0
  %v245 = vadd.f32 0.0, %v244
  %v246 = vpop.f32.mrb[0].mxu0
  %247 = vmatprep.mubr.f32.mxu0 0.0
  %248 = vmatmul.mubr.f32.gmra.mrb[0].mxu0 %v74
  %v249 = vpop.f32.mrb[0].mxu0
  %v250 = vadd.f32 0.0, %v249
  %v251 = vpop.f32.mrb[0].mxu0
  %252 = vmatprep.mubr.f32.mxu0 0.0
  %253 = vmatmul.mubr.f32.gmra.mrb[0].mxu0 %v77
  %v254 = vpop.f32.mrb[0].mxu0
  %v255 = vadd.f32 0.0, %v254
  %v256 = vpop.f32.mrb[0].mxu0
  %257 = vmatprep.mubr.f32.mxu0 0.0
  %258 = vmatmul.mubr.f32.gmra.mrb[0].mxu0 %v80
  %v259 = vpop.f32.mrb[0].mxu0
  %v260 = vadd.f32 0.0, %v259
  %v261 = vpop.f32.mrb[0].mxu0
  %262 = vmatprep.mubr.f32.mxu0 0.0
  %263 = vmatmul.mubr.f32.gmra.mrb[0].mxu0 %v83
  %v264 = vpop.f32.mrb[0].mxu0
  %v265 = vadd.f32 0.0, %v264
  %v266 = vpop.f32.mrb[0].mxu0
  %267 = vmatprep.mubr.f32.mxu0 0.0
  %268 = vmatmul.mubr.f32.gmra.mrb[0].mxu0 %v86
  %v269 = vpop.f32.mrb[0].mxu0
  %v270 = vadd.f32 0.0, %v269
  %v271 = vpop.f32.mrb[0].mxu0
  %272 = vmatprep.mubr.f32.mxu0 0.0
  %273 = vmatmul.mubr.f32.gmra.mrb[0].mxu0 %v89
  %v274 = vpop.f32.mrb[0].mxu0
  %v275 = vadd.f32 0.0, %v274
  %v276 = vpop.f32.mrb[0].mxu0
  %277 = vmatprep.mubr.f32.mxu0 0.0
  %278 = vmatmul.mubr.f32.gmra.mrb[0].mxu0 %v92
  %v279 = vpop.f32.mrb[0].mxu0
  %v280 = vadd.f32 0.0, %v279
  %v281 = vpop.f32.mrb[0].mxu0
  %282 = vmatprep.mubr.f32.mxu0 0.0
  %283 = vmatmul.mubr.f32.gmra.mrb[0].mxu0 %v95
  %v284 = vpop.f32.mrb[0].mxu0
  %v285 = vadd.f32 0.0, %v284
  %v286 = vpop.f32.mrb[0].mxu0
  %287 = vmatprep.mubr.f32.mxu0 0.0
  %288 = vmatmul.mubr.f32.gmra.mrb[0].mxu0 %v98
  %v289 = vpop.f32.mrb[0].mxu0
  %v290 = vadd.f32 0.0, %v289
  %v291 = vpop.f32.mrb[0].mxu0
  %292 = vmatprep.mubr.f32.mxu0 0.0
  %293 = vmatmul.mubr.f32.gmra.mrb[0].mxu0 %v101
  %v294 = vpop.f32.mrb[0].mxu0
  %v295 = vadd.f32 0.0, %v294
  %v296 = vpop.f32.mrb[0].mxu0
  %297 = vmatprep.mubr.f32.mxu0 0.0
  %298 = vmatmul.mubr.f32.gmra.mrb[0].mxu0 %v104
  %v299 = vpop.f32.mrb[0].mxu0
  %v300 = vadd.f32 0.0, %v299
  %v301 = vpop.f32.mrb[0].mxu0
  %302 = vmatprep.mubr.f32.mxu0 0.0
  %303 = vmatmul.mubr.f32.gmra.mrb[0].mxu0 %v107
  %v304 = vpop.f32.mrb[0].mxu0
  %v305 = vadd.f32 0.0, %v304
  %v306 = vpop.f32.mrb[0].mxu0
  %307 = vmatprep.mubr.f32.mxu0 0.0
  %308 = vmatmul.mubr.f32.gmra.mrb[0].mxu0 %v110
  %v309 = vpop.f32.mrb[0].mxu0
  %v310 = vadd.f32 0.0, %v309
  %v311 = vpop.f32.mrb[0].mxu0
  %312 = vmatprep.mubr.f32.mxu0 0.0
  %313 = vmatmul.mubr.f32.gmra.mrb[0].mxu0 %v113
  %v314 = vpop.f32.mrb[0].mxu0
  %v315 = vadd.f32 0.0, %v314
  %v316 = vpop.f32.mrb[0].mxu0
  %317 = vmatprep.mubr.f32.mxu0 0.0
  %318 = vmatmul.mubr.f32.gmra.mrb[0].mxu0 %v116
  %v319 = vpop.f32.mrb[0].mxu0
  %v320 = vadd.f32 0.0, %v319
  %v321 = vpop.f32.mrb[0].mxu0
  %322 = vmatprep.mubr.f32.mxu0 0.0
  %323 = vmatmul.mubr.f32.gmra.mrb[0].mxu0 %v119
  %v324 = vpop.f32.mrb[0].mxu0
  %v325 = vadd.f32 0.0, %v324
  %v326 = vpop.f32.mrb[0].mxu0
  %327 = vmatprep.mubr.f32.mxu0 0.0
  %328 = vmatmul.mubr.f32.gmra.mrb[0].mxu0 %v122
  %v329 = vpop.f32.mrb[0].mxu0
  %v330 = vadd.f32 0.0, %v329
  %v331 = vpop.f32.mrb[0].mxu0
  %332 = vmatprep.mubr.f32.mxu0 0.0
  %333 = vmatmul.mubr.f32.gmra.mrb[0].mxu0 %v125
  %v334 = vpop.f32.mrb[0].mxu0
  %v335 = vadd.f32 0.0, %v334
  %v336 = vpop.f32.mrb[0].mxu0
  %337 = vmatprep.mubr.f32.mxu0 0.0
  %338 = vmatmul.mubr.f32.gmra.mrb[0].mxu0 %v128
  %v339 = vpop.f32.mrb[0].mxu0
  %v340 = vadd.f32 0.0, %v339
  %v341 = vpop.f32.mrb[0].mxu0
  %342 = vmatprep.mubr.f32.mxu0 0.0
  %343 = vmatmul.mubr.f32.gmra.mrb[0].mxu0 %v131
  %v344 = vpop.f32.mrb[0].mxu0
  %v345 = vadd.f32 0.0, %v344
  %v346 = vpop.f32.mrb[0].mxu0
  %347 = vmatprep.mubr.f32.mxu0 0.0
  %348 = vmatmul.mubr.f32.gmra.mrb[0].mxu0 %v134
  %v349 = vpop.f32.mrb[0].mxu0
  %v350 = vadd.f32 0.0, %v349
  %v351 = vpop.f32.mrb[0].mxu0
  %352 = vmatprep.mubr.f32.mxu0 0.0
  %353 = vmatmul.mubr.f32.gmra.mrb[0].mxu0 %v137
  %v354 = vpop.f32.mrb[0].mxu0
  %v355 = vadd.f32 0.0, %v354
  %v356 = vpop.f32.mrb[0].mxu0
  %357 = vmatprep.mubr.f32.mxu0 0.0
  %358 = vmatmul.mubr.f32.gmra.mrb[0].mxu0 %v140
  %v359 = vpop.f32.mrb[0].mxu0
  %v360 = vadd.f32 0.0, %v359
  %v361 = vpop.f32.mrb[0].mxu0
  %362 = vmatprep.mubr.f32.mxu0 0.0
  %363 = vmatmul.mubr.f32.gmra.mrb[0].mxu0 %v143
  %v364 = vpop.f32.mrb[0].mxu0
  %v365 = vadd.f32 0.0, %v364
  %v366 = vpop.f32.mrb[0].mxu0
  %367 = vmatprep.mubr.f32.mxu0 0.0
  %368 = vmatmul.mubr.f32.gmra.mrb[0].mxu0 %v146
  %v369 = vpop.f32.mrb[0].mxu0
  %v370 = vadd.f32 0.0, %v369
  %v371 = vpop.f32.mrb[0].mxu0
  %372 = vdwg.mxu0
  %vm373 = vcmask 261120
  %374 = vst.msk [vmem:[%s2] sm:$0xff] %vm373, %v215
  %375 = vst.msk [vmem:[%s2 + $0x8] sm:$0xff] %vm373, %v220
  %376 = vst.msk [vmem:[%s2 + $0x10] sm:$0xff] %vm373, %v225
  %377 = vst.msk [vmem:[%s2 + $0x18] sm:$0xff] %vm373, %v230
  %378 = vst.msk [vmem:[%s2 + $0x20] sm:$0xff] %vm373, %v235
  %379 = vst.msk [vmem:[%s2 + $0x28] sm:$0xff] %vm373, %v240
  %380 = vst.msk [vmem:[%s2 + $0x30] sm:$0xff] %vm373, %v245
  %381 = vst.msk [vmem:[%s2 + $0x38] sm:$0xff] %vm373, %v250
  %382 = vst.msk [vmem:[%s2 + $0x40] sm:$0xff] %vm373, %v255
  %383 = vst.msk [vmem:[%s2 + $0x48] sm:$0xff] %vm373, %v260
  %384 = vst.msk [vmem:[%s2 + $0x50] sm:$0xff] %vm373, %v265
  %385 = vst.msk [vmem:[%s2 + $0x58] sm:$0xff] %vm373, %v270
  %386 = vst.msk [vmem:[%s2 + $0x60] sm:$0xff] %vm373, %v275
  %387 = vst.msk [vmem:[%s2 + $0x68] sm:$0xff] %vm373, %v280
  %388 = vst.msk [vmem:[%s2 + $0x70] sm:$0xff] %vm373, %v285
  %389 = vst.msk [vmem:[%s2 + $0x78] sm:$0xff] %vm373, %v290
  %390 = vst.msk [vmem:[%s2 + $0x80] sm:$0xff] %vm373, %v295
  %391 = vst.msk [vmem:[%s2 + $0x88] sm:$0xff] %vm373, %v300
  %392 = vst.msk [vmem:[%s2 + $0x90] sm:$0xff] %vm373, %v305
  %393 = vst.msk [vmem:[%s2 + $0x98] sm:$0xff] %vm373, %v310
  %394 = vst.msk [vmem:[%s2 + $0xa0] sm:$0xff] %vm373, %v315
  %395 = vst.msk [vmem:[%s2 + $0xa8] sm:$0xff] %vm373, %v320
  %396 = vst.msk [vmem:[%s2 + $0xb0] sm:$0xff] %vm373, %v325
  %397 = vst.msk [vmem:[%s2 + $0xb8] sm:$0xff] %vm373, %v330
  %398 = vst.msk [vmem:[%s2 + $0xc0] sm:$0xff] %vm373, %v335
  %399 = vst.msk [vmem:[%s2 + $0xc8] sm:$0xff] %vm373, %v340
  %400 = vst.msk [vmem:[%s2 + $0xd0] sm:$0xff] %vm373, %v345
  %401 = vst.msk [vmem:[%s2 + $0xd8] sm:$0xff] %vm373, %v350
  %402 = vst.msk [vmem:[%s2 + $0xe0] sm:$0xff] %vm373, %v355
  %403 = vst.msk [vmem:[%s2 + $0xe8] sm:$0xff] %vm373, %v360
  %404 = vst.msk [vmem:[%s2 + $0xf0] sm:$0xff] %vm373, %v365
  %405 = vst.msk [vmem:[%s2 + $0xf8] sm:$0xff] %vm373, %v370
  // Predicated region
  $region10: #{tpu_custom_call.1} parent=0 // pred_check
    _
  $region11: #{tpu_custom_call.1} parent=0 // pred_check_branch
    %407 = sbr.rel (0) target = $region13
  $region12: #{tpu_custom_call.1} parent=0 // pred_region
    _
  $region13: #{tpu_custom_call.1} parent=0 // pred_fallthru
    _
  // Predicated region
  $region14: #{tpu_custom_call.1} parent=0 // pred_check
    _
  $region15: #{tpu_custom_call.1} parent=0 // pred_check_branch
    %409 = sbr.rel (0) target = $region17
  $region16: #{tpu_custom_call.1} parent=0 // pred_region
    _
  $region17: #{tpu_custom_call.1} parent=0 // pred_fallthru
    _

</llo_original>
